<compile_context>
chip_gen: v7x
topology: tpu7x:2x2x1
jax: 0.10.0
libtpu: 0.0.40
codegen_flags: <defaults>
</compile_context>

<pallas_src>
import jax
import jax.numpy as jnp
from jax.experimental import pallas as pl
from jax.experimental.pallas import tpu as pltpu

C = 96            # real channels (= depthwise groups)
CP = 128          # lane-padded channel count
H = W = 14        # input spatial
OH = OW = 7       # output spatial (stride 2, pad 1)
EPS = 1e-5


def dwconv_bn_kernel(x_ref, w_ref, gamma_ref, beta_ref, out_ref):
    # x_ref    : (8, 2, 8, 2*CP) padded input; dims = (row_pair, row_parity, col_pair, col_parity*CP)
    #            lanes [0:CP] = even padded column of the pair, [CP:2CP] = odd padded column.
    # w_ref    : (9, 1, 1, CP)   depthwise taps, index = kh*3 + kw
    # gamma_ref/beta_ref : (1, 1, CP)
    # out_ref  : (OH, OW, CP)
    #
    # One independent partial accumulator per kh (3-way ILP): each chain is an init-from-product
    # plus two mul/add pairs; the chains share no vregs until the final tree-sum.
    partial = []
    for kh in range(3):
        r0, parity = kh // 2, kh % 2
        rows = x_ref[r0:r0 + OH, parity]                     # (7, 8, 2*CP) - one ref load per kh
        even = rows[:, :, 0:CP]                              # padded cols 2j    (7, 8, CP)
        odd = rows[:, :, CP:2 * CP]                          # padded cols 2j+1  (7, 8, CP)
        p = even[:, 0:OW, :] * w_ref[kh * 3 + 0]             # kw = 0 -> col 2j
        p = p + odd[:, 0:OW, :] * w_ref[kh * 3 + 1]          # kw = 1 -> col 2j+1
        # kw = 2 -> col 2j+2 = even column of pair j+1 (static sublane-offset slice; the
        # pltpu.roll(..., axis=1) XLU variant only pays if the dump shows a materialized copy).
        p = p + even[:, 1:OW + 1, :] * w_ref[kh * 3 + 2]
        partial.append(p)
    acc = (partial[0] + partial[1]) + partial[2]             # (OH, OW, CP) f32

    # BatchNorm2d (training mode): per-channel batch stats over N*OH*OW = 49 positions,
    # biased variance, centered two-pass form (no E[x^2] - mean^2 cancellation).
    inv_n = 1.0 / float(OH * OW)
    mean = jnp.sum(acc, axis=(0, 1), keepdims=True) * inv_n          # (1, 1, CP)
    cen = acc - mean
    var = jnp.sum(cen * cen, axis=(0, 1), keepdims=True) * inv_n     # (1, 1, CP)
    scale = jax.lax.rsqrt(var + EPS) * gamma_ref[...]                # rsqrt -> EUP slot
    out_ref[...] = cen * scale + beta_ref[...]
    # TODO(synk): running_mean/running_var momentum update (training-side state) is not modeled.


@jax.jit
def conv_bn_forward(x_nchw, w_oihw, gamma, beta):
    # x_nchw: (1, 96, 14, 14), w_oihw: (96, 1, 3, 3), gamma/beta: (96,)
    x_hwc = jnp.transpose(x_nchw[0].astype(jnp.float32), (1, 2, 0))            # (14, 14, 96)
    # one pad op: spatial halo (+1 each side) and channel pad 96 -> 128 (lane-dense)
    x_pad = jnp.pad(x_hwc, ((1, 1), (1, 1), (0, CP - C)))                      # (16, 16, 128)
    # metadata-only reshape: rows -> (pair, parity); adjacent column pair packed on the lane dim
    x_packed = x_pad.reshape(8, 2, 8, 2 * CP)                                  # (8, 2, 8, 256)

    w_taps = jnp.transpose(w_oihw[:, 0, :, :], (1, 2, 0)).astype(jnp.float32)  # (3, 3, 96)
    w_taps = jnp.pad(w_taps, ((0, 0), (0, 0), (0, CP - C))).reshape(9, 1, 1, CP)
    g = jnp.pad(gamma.astype(jnp.float32), (0, CP - C)).reshape(1, 1, CP)
    b = jnp.pad(beta.astype(jnp.float32), (0, CP - C)).reshape(1, 1, CP)

    vmem = pl.BlockSpec(memory_space=pltpu.MemorySpace.VMEM)
    bytes_accessed = 4 * (8 * 2 * 8 * 2 * CP + 9 * CP + 2 * CP + OH * OW * CP)
    out_hwc = pl.pallas_call(
        dwconv_bn_kernel,
        out_shape=jax.ShapeDtypeStruct((OH, OW, CP), jnp.float32),
        in_specs=[vmem, vmem, vmem, vmem],
        out_specs=vmem,
        compiler_params=pltpu.CompilerParams(allow_input_fusion=[0, 1, 2, 3]),
        cost_estimate=pl.CostEstimate(
            flops=2 * 9 * OH * OW * C + 8 * OH * OW * C,   # conv taps + BN normalize
            transcendentals=CP,                            # per-channel rsqrt
            bytes_accessed=bytes_accessed),
    )(x_packed, w_taps, g, b)
    # NCHW at the module boundary (drop channel padding).  A channels-last consumer could take
    # out_hwc[:, :, :C] directly and skip this relayout entirely.
    return jnp.transpose(out_hwc[:, :, :C], (2, 0, 1))[None]                   # (1, 96, 7, 7)


@jax.jit
def reference(x_nchw, w_oihw, gamma, beta):
    y = jax.lax.conv_general_dilated(
        x_nchw, w_oihw, window_strides=(2, 2), padding=((1, 1), (1, 1)),
        dimension_numbers=("NCHW", "OIHW", "NCHW"), feature_group_count=C)
    mean = jnp.mean(y, axis=(0, 2, 3), keepdims=True)
    var = jnp.mean((y - mean) ** 2, axis=(0, 2, 3), keepdims=True)
    return (y - mean) * jax.lax.rsqrt(var + EPS) * gamma.reshape(1, C, 1, 1) + beta.reshape(1, C, 1, 1)


if __name__ == "__main__":
    key = jax.random.PRNGKey(0)
    kx, kw, kg, kb = jax.random.split(key, 4)
    x = jax.random.normal(kx, (1, C, H, W), dtype=jnp.float32)
    w = jax.random.normal(kw, (C, 1, 3, 3), dtype=jnp.float32) * 0.1    # depthwise conv weight, bias=False
    gamma = 1.0 + 0.1 * jax.random.normal(kg, (C,), dtype=jnp.float32)  # BN affine weight
    beta = 0.1 * jax.random.normal(kb, (C,), dtype=jnp.float32)         # BN affine bias

    out = conv_bn_forward(x, w, gamma, beta)
    out = jax.block_until_ready(out)

    ref = jax.block_until_ready(reference(x, w, gamma, beta))
    assert out.shape == (1, C, OH, OW), out.shape
    assert jnp.allclose(out, ref, atol=1e-4, rtol=1e-4), float(jnp.max(jnp.abs(out - ref)))
    print("KERNEL_OK")
</pallas_src>

<mosaic_0001>
module attributes {stable_mosaic.version = 11 : i64} {
  func.func @dwconv_bn_kernel(%arg0: memref<8x2x8x256xf32, #tpu.memory_space<vmem>>, %arg1: memref<9x1x1x128xf32, #tpu.memory_space<vmem>>, %arg2: memref<1x1x128xf32, #tpu.memory_space<vmem>>, %arg3: memref<1x1x128xf32, #tpu.memory_space<vmem>>, %arg4: memref<7x7x128xf32, #tpu.memory_space<vmem>>) attributes {dimension_semantics = [], scalar_prefetch = 0 : i64, scratch_operands = 0 : i64, tpu.core_type = #tpu.core_type<tc>} {
    %c0 = arith.constant 0 : index
    %c0_0 = arith.constant 0 : index
    %c0_1 = arith.constant 0 : index
    %c0_2 = arith.constant 0 : index
    %0 = vector.load %arg0[%c0, %c0_0, %c0_1, %c0_2] : memref<8x2x8x256xf32, #tpu.memory_space<vmem>>, vector<7x1x8x256xf32>
    %1 = vector.shape_cast %0 : vector<7x1x8x256xf32> to vector<7x8x256xf32>
    %2 = vector.extract_strided_slice %1 {offsets = [0, 0, 0], sizes = [7, 8, 128], strides = [1, 1, 1]} : vector<7x8x256xf32> to vector<7x8x128xf32>
    %3 = vector.extract_strided_slice %1 {offsets = [0, 0, 128], sizes = [7, 8, 128], strides = [1, 1, 1]} : vector<7x8x256xf32> to vector<7x8x128xf32>
    %4 = vector.extract_strided_slice %2 {offsets = [0, 0, 0], sizes = [7, 7, 128], strides = [1, 1, 1]} : vector<7x8x128xf32> to vector<7x7x128xf32>
    %c0_3 = arith.constant 0 : index
    %c0_4 = arith.constant 0 : index
    %c0_5 = arith.constant 0 : index
    %c0_6 = arith.constant 0 : index
    %5 = vector.load %arg1[%c0_3, %c0_4, %c0_5, %c0_6] : memref<9x1x1x128xf32, #tpu.memory_space<vmem>>, vector<1x1x1x128xf32>
    %6 = vector.shape_cast %5 : vector<1x1x1x128xf32> to vector<1x1x128xf32>
    %7 = vector.broadcast %6 : vector<1x1x128xf32> to vector<7x7x128xf32>
    %8 = arith.mulf %4, %7 : vector<7x7x128xf32>
    %9 = vector.extract_strided_slice %3 {offsets = [0, 0, 0], sizes = [7, 7, 128], strides = [1, 1, 1]} : vector<7x8x128xf32> to vector<7x7x128xf32>
    %c1 = arith.constant 1 : index
    %c0_7 = arith.constant 0 : index
    %c0_8 = arith.constant 0 : index
    %c0_9 = arith.constant 0 : index
    %10 = vector.load %arg1[%c1, %c0_7, %c0_8, %c0_9] : memref<9x1x1x128xf32, #tpu.memory_space<vmem>>, vector<1x1x1x128xf32>
    %11 = vector.shape_cast %10 : vector<1x1x1x128xf32> to vector<1x1x128xf32>
    %12 = vector.broadcast %11 : vector<1x1x128xf32> to vector<7x7x128xf32>
    %13 = arith.mulf %9, %12 : vector<7x7x128xf32>
    %14 = arith.addf %8, %13 : vector<7x7x128xf32>
    %15 = vector.extract_strided_slice %2 {offsets = [0, 1, 0], sizes = [7, 7, 128], strides = [1, 1, 1]} : vector<7x8x128xf32> to vector<7x7x128xf32>
    %c2 = arith.constant 2 : index
    %c0_10 = arith.constant 0 : index
    %c0_11 = arith.constant 0 : index
    %c0_12 = arith.constant 0 : index
    %16 = vector.load %arg1[%c2, %c0_10, %c0_11, %c0_12] : memref<9x1x1x128xf32, #tpu.memory_space<vmem>>, vector<1x1x1x128xf32>
    %17 = vector.shape_cast %16 : vector<1x1x1x128xf32> to vector<1x1x128xf32>
    %18 = vector.broadcast %17 : vector<1x1x128xf32> to vector<7x7x128xf32>
    %19 = arith.mulf %15, %18 : vector<7x7x128xf32>
    %20 = arith.addf %14, %19 : vector<7x7x128xf32>
    %c0_13 = arith.constant 0 : index
    %c1_14 = arith.constant 1 : index
    %c0_15 = arith.constant 0 : index
    %c0_16 = arith.constant 0 : index
    %21 = vector.load %arg0[%c0_13, %c1_14, %c0_15, %c0_16] : memref<8x2x8x256xf32, #tpu.memory_space<vmem>>, vector<7x1x8x256xf32>
    %22 = vector.shape_cast %21 : vector<7x1x8x256xf32> to vector<7x8x256xf32>
    %23 = vector.extract_strided_slice %22 {offsets = [0, 0, 0], sizes = [7, 8, 128], strides = [1, 1, 1]} : vector<7x8x256xf32> to vector<7x8x128xf32>
    %24 = vector.extract_strided_slice %22 {offsets = [0, 0, 128], sizes = [7, 8, 128], strides = [1, 1, 1]} : vector<7x8x256xf32> to vector<7x8x128xf32>
    %25 = vector.extract_strided_slice %23 {offsets = [0, 0, 0], sizes = [7, 7, 128], strides = [1, 1, 1]} : vector<7x8x128xf32> to vector<7x7x128xf32>
    %c3 = arith.constant 3 : index
    %c0_17 = arith.constant 0 : index
    %c0_18 = arith.constant 0 : index
    %c0_19 = arith.constant 0 : index
    %26 = vector.load %arg1[%c3, %c0_17, %c0_18, %c0_19] : memref<9x1x1x128xf32, #tpu.memory_space<vmem>>, vector<1x1x1x128xf32>
    %27 = vector.shape_cast %26 : vector<1x1x1x128xf32> to vector<1x1x128xf32>
    %28 = vector.broadcast %27 : vector<1x1x128xf32> to vector<7x7x128xf32>
    %29 = arith.mulf %25, %28 : vector<7x7x128xf32>
    %30 = vector.extract_strided_slice %24 {offsets = [0, 0, 0], sizes = [7, 7, 128], strides = [1, 1, 1]} : vector<7x8x128xf32> to vector<7x7x128xf32>
    %c4 = arith.constant 4 : index
    %c0_20 = arith.constant 0 : index
    %c0_21 = arith.constant 0 : index
    %c0_22 = arith.constant 0 : index
    %31 = vector.load %arg1[%c4, %c0_20, %c0_21, %c0_22] : memref<9x1x1x128xf32, #tpu.memory_space<vmem>>, vector<1x1x1x128xf32>
    %32 = vector.shape_cast %31 : vector<1x1x1x128xf32> to vector<1x1x128xf32>
    %33 = vector.broadcast %32 : vector<1x1x128xf32> to vector<7x7x128xf32>
    %34 = arith.mulf %30, %33 : vector<7x7x128xf32>
    %35 = arith.addf %29, %34 : vector<7x7x128xf32>
    %36 = vector.extract_strided_slice %23 {offsets = [0, 1, 0], sizes = [7, 7, 128], strides = [1, 1, 1]} : vector<7x8x128xf32> to vector<7x7x128xf32>
    %c5 = arith.constant 5 : index
    %c0_23 = arith.constant 0 : index
    %c0_24 = arith.constant 0 : index
    %c0_25 = arith.constant 0 : index
    %37 = vector.load %arg1[%c5, %c0_23, %c0_24, %c0_25] : memref<9x1x1x128xf32, #tpu.memory_space<vmem>>, vector<1x1x1x128xf32>
    %38 = vector.shape_cast %37 : vector<1x1x1x128xf32> to vector<1x1x128xf32>
    %39 = vector.broadcast %38 : vector<1x1x128xf32> to vector<7x7x128xf32>
    %40 = arith.mulf %36, %39 : vector<7x7x128xf32>
    %41 = arith.addf %35, %40 : vector<7x7x128xf32>
    %c1_26 = arith.constant 1 : index
    %c0_27 = arith.constant 0 : index
    %c0_28 = arith.constant 0 : index
    %c0_29 = arith.constant 0 : index
    %42 = vector.load %arg0[%c1_26, %c0_27, %c0_28, %c0_29] : memref<8x2x8x256xf32, #tpu.memory_space<vmem>>, vector<7x1x8x256xf32>
    %43 = vector.shape_cast %42 : vector<7x1x8x256xf32> to vector<7x8x256xf32>
    %44 = vector.extract_strided_slice %43 {offsets = [0, 0, 0], sizes = [7, 8, 128], strides = [1, 1, 1]} : vector<7x8x256xf32> to vector<7x8x128xf32>
    %45 = vector.extract_strided_slice %43 {offsets = [0, 0, 128], sizes = [7, 8, 128], strides = [1, 1, 1]} : vector<7x8x256xf32> to vector<7x8x128xf32>
    %46 = vector.extract_strided_slice %44 {offsets = [0, 0, 0], sizes = [7, 7, 128], strides = [1, 1, 1]} : vector<7x8x128xf32> to vector<7x7x128xf32>
    %c6 = arith.constant 6 : index
    %c0_30 = arith.constant 0 : index
    %c0_31 = arith.constant 0 : index
    %c0_32 = arith.constant 0 : index
    %47 = vector.load %arg1[%c6, %c0_30, %c0_31, %c0_32] : memref<9x1x1x128xf32, #tpu.memory_space<vmem>>, vector<1x1x1x128xf32>
    %48 = vector.shape_cast %47 : vector<1x1x1x128xf32> to vector<1x1x128xf32>
    %49 = vector.broadcast %48 : vector<1x1x128xf32> to vector<7x7x128xf32>
    %50 = arith.mulf %46, %49 : vector<7x7x128xf32>
    %51 = vector.extract_strided_slice %45 {offsets = [0, 0, 0], sizes = [7, 7, 128], strides = [1, 1, 1]} : vector<7x8x128xf32> to vector<7x7x128xf32>
    %c7 = arith.constant 7 : index
    %c0_33 = arith.constant 0 : index
    %c0_34 = arith.constant 0 : index
    %c0_35 = arith.constant 0 : index
    %52 = vector.load %arg1[%c7, %c0_33, %c0_34, %c0_35] : memref<9x1x1x128xf32, #tpu.memory_space<vmem>>, vector<1x1x1x128xf32>
    %53 = vector.shape_cast %52 : vector<1x1x1x128xf32> to vector<1x1x128xf32>
    %54 = vector.broadcast %53 : vector<1x1x128xf32> to vector<7x7x128xf32>
    %55 = arith.mulf %51, %54 : vector<7x7x128xf32>
    %56 = arith.addf %50, %55 : vector<7x7x128xf32>
    %57 = vector.extract_strided_slice %44 {offsets = [0, 1, 0], sizes = [7, 7, 128], strides = [1, 1, 1]} : vector<7x8x128xf32> to vector<7x7x128xf32>
    %c8 = arith.constant 8 : index
    %c0_36 = arith.constant 0 : index
    %c0_37 = arith.constant 0 : index
    %c0_38 = arith.constant 0 : index
    %58 = vector.load %arg1[%c8, %c0_36, %c0_37, %c0_38] : memref<9x1x1x128xf32, #tpu.memory_space<vmem>>, vector<1x1x1x128xf32>
    %59 = vector.shape_cast %58 : vector<1x1x1x128xf32> to vector<1x1x128xf32>
    %60 = vector.broadcast %59 : vector<1x1x128xf32> to vector<7x7x128xf32>
    %61 = arith.mulf %57, %60 : vector<7x7x128xf32>
    %62 = arith.addf %56, %61 : vector<7x7x128xf32>
    %63 = arith.addf %20, %41 : vector<7x7x128xf32>
    %64 = arith.addf %63, %62 : vector<7x7x128xf32>
    %cst = arith.constant dense<0.000000e+00> : vector<128xf32>
    %65 = vector.multi_reduction <add>, %64, %cst [0, 1] : vector<7x7x128xf32> to vector<128xf32>
    %66 = vector.shape_cast %65 : vector<128xf32> to vector<1x1x128xf32>
    %cst_39 = arith.constant 0.0204081628 : f32
    %67 = vector.broadcast %cst_39 : f32 to vector<1x1x128xf32>
    %68 = arith.mulf %66, %67 : vector<1x1x128xf32>
    %69 = vector.broadcast %68 : vector<1x1x128xf32> to vector<7x7x128xf32>
    %70 = arith.subf %64, %69 : vector<7x7x128xf32>
    %71 = arith.mulf %70, %70 : vector<7x7x128xf32>
    %cst_40 = arith.constant dense<0.000000e+00> : vector<128xf32>
    %72 = vector.multi_reduction <add>, %71, %cst_40 [0, 1] : vector<7x7x128xf32> to vector<128xf32>
    %73 = vector.shape_cast %72 : vector<128xf32> to vector<1x1x128xf32>
    %cst_41 = arith.constant 0.0204081628 : f32
    %74 = vector.broadcast %cst_41 : f32 to vector<1x1x128xf32>
    %75 = arith.mulf %73, %74 : vector<1x1x128xf32>
    %cst_42 = arith.constant 9.99999974E-6 : f32
    %76 = vector.broadcast %cst_42 : f32 to vector<1x1x128xf32>
    %77 = arith.addf %75, %76 : vector<1x1x128xf32>
    %78 = math.rsqrt %77 : vector<1x1x128xf32>
    %c0_43 = arith.constant 0 : index
    %c0_44 = arith.constant 0 : index
    %c0_45 = arith.constant 0 : index
    %79 = vector.load %arg2[%c0_43, %c0_44, %c0_45] : memref<1x1x128xf32, #tpu.memory_space<vmem>>, vector<1x1x128xf32>
    %80 = arith.mulf %78, %79 : vector<1x1x128xf32>
    %81 = vector.broadcast %80 : vector<1x1x128xf32> to vector<7x7x128xf32>
    %82 = arith.mulf %70, %81 : vector<7x7x128xf32>
    %c0_46 = arith.constant 0 : index
    %c0_47 = arith.constant 0 : index
    %c0_48 = arith.constant 0 : index
    %83 = vector.load %arg3[%c0_46, %c0_47, %c0_48] : memref<1x1x128xf32, #tpu.memory_space<vmem>>, vector<1x1x128xf32>
    %84 = vector.broadcast %83 : vector<1x1x128xf32> to vector<7x7x128xf32>
    %85 = arith.addf %82, %84 : vector<7x7x128xf32>
    %c0_49 = arith.constant 0 : index
    %c0_50 = arith.constant 0 : index
    %c0_51 = arith.constant 0 : index
    %86 = vector.load %arg4[%c0_49, %c0_50, %c0_51] : memref<7x7x128xf32, #tpu.memory_space<vmem>>, vector<7x7x128xf32>
    tpu.vector_store %arg4[%c0_49, %c0_50, %c0_51], %85 {strides = array<i32>} : memref<7x7x128xf32, #tpu.memory_space<vmem>>, vector<7x7x128xf32>,
    return
  }
}

</mosaic_0001>

<llo_original>
// kernel: conv_bn_forward.2
$region0: #{conv_bn_forward.2}
  #allocation0 [shape = 'u32[]', space=smem, size = 0x4, offset = 0x4, fixed_abs, tag = 'smem constant byte address 0x4 - core index']
  #allocation1 [shape = 'u32[144,128]{1,0:T(1,128)}', space=vmem, size = 0x12000, scoped, tag = 'internal scratch']
  #allocation2 [shape = 'u32[2048]{0}', space=vmem, size = 0x2000, scoped, tag = 'scoped memory for conv_bn_forward.2']
  #allocation3 [shape = 'u32[2048]{0}', space=vmem, size = 0x2000, scoped, tag = 'scoped memory for conv_bn_forward.2']
  #allocation4 [shape = 'u32[2048]{0}', space=vmem, size = 0x2000, scoped, tag = 'scoped memory for conv_bn_forward.2']
  #allocation5 [shape = 'u32[2048]{0}', space=vmem, size = 0x2000, scoped, tag = 'scoped memory for conv_bn_forward.2']
  #allocation6 [shape = 'u32[2048]{0}', space=vmem, size = 0x2000, scoped, tag = 'scoped memory for conv_bn_forward.2']
  #allocation7 [shape = 'u32[2048]{0}', space=vmem, size = 0x2000, scoped, tag = 'scoped memory for conv_bn_forward.2']
  #allocation8 [shape = 'u32[2048]{0}', space=vmem, size = 0x2000, scoped, tag = 'scoped memory for conv_bn_forward.2']
  #allocation9 [shape = 'u32[2048]{0}', space=vmem, size = 0x2000, scoped, tag = 'scoped memory for conv_bn_forward.2']
  #allocation10 [shape = 'u32[2048]{0}', space=vmem, size = 0x2000, scoped, tag = 'scoped memory for conv_bn_forward.2']
  #allocation11 [shape = 'u32[2048]{0}', space=vmem, size = 0x2000, scoped, tag = 'scoped memory for conv_bn_forward.2']
  %s0 = inlined_call_operand.vmem [shape: f32[8,2,8,256], index: 0, kind: input, shape index: {}]
  %s1 = inlined_call_operand.vmem [shape: f32[9,1,1,128], index: 1, kind: input, shape index: {}]
  %s2 = inlined_call_operand.vmem [shape: f32[96], index: 2, kind: input, shape index: {}]
  %s3 = inlined_call_operand.<no memory space> [shape: f32[], index: 3, kind: input, shape index: {}]
  %s4 = inlined_call_operand.vmem [shape: f32[96], index: 4, kind: input, shape index: {}]
  %s5 = inlined_call_operand.vmem [shape: f32[7,7,128], index: 5, kind: output, shape index: {}]
  %s6 = sld [smem:[#allocation0]]
  $region26: #{conv_bn_forward.2} parent=0
    _
  %s8 = ssub.s32 1, %s6
  %s9 = scalar_select 0, %s8, %s6
  %v10 = vstv %s3
  %v11 = vstv %s3
  $region1: #{conv_bn_forward.2} parent=0
    #allocation12 [shape = 'u8[512]{0}', space=vmem, size = 0x400, dematerialized = true, scoped, tag = 'FusionAdapter Buffer %fusion.2 = f32[1,1,128]{2,1,0:T(1,128)} fusion(%param_4.1, %param_3.4), kind=kLoop, calls=%fused_computation.5.clone, metadata={op_name="jit(conv_bn_forward)/reshape" stack_frame_id=16}']
    #allocation13 [shape = 'u8[512]{0}', space=vmem, size = 0x400, dematerialized = true, scoped, tag = 'FusionAdapter Buffer %fusion.1 = f32[1,1,128]{2,1,0:T(1,128)} fusion(%param_2.3, %param_3.4), kind=kLoop, calls=%fused_computation.4.clone, metadata={op_name="jit(conv_bn_forward)/reshape" stack_frame_id=18}']
    // Predicated region
    $region2: #{conv_bn_forward.2} parent=1 // pred_check
      _
    $region3: #{conv_bn_forward.2} parent=1 // pred_check_branch
      %13 = sbr.rel (0) target = $region5
    $region4: #{conv_bn_forward.2} parent=1 // pred_region
      _
    $region5: #{conv_bn_forward.2} parent=1 // pred_fallthru
      _
    // Predicated region
    $region6: #{conv_bn_forward.2} parent=1 // pred_check
      _
    $region7: #{conv_bn_forward.2} parent=1 // pred_check_branch
      %15 = sbr.rel (0) target = $region9
    $region8: #{conv_bn_forward.2} parent=1 // pred_region
      _
    $region9: #{conv_bn_forward.2} parent=1 // pred_fallthru
      _
    // Predicated region
    $region10: #{conv_bn_forward.2} parent=1 // pred_check
      _
    $region11: #{conv_bn_forward.2} parent=1 // pred_check_branch
      %17 = sbr.rel (0) target = $region13
    $region12: #{conv_bn_forward.2} parent=1 // pred_region
      _
    $region13: #{conv_bn_forward.2} parent=1 // pred_fallthru
      _
    // Predicated region
    $region14: #{conv_bn_forward.2} parent=1 // pred_check
      _
    $region15: #{conv_bn_forward.2} parent=1 // pred_check_branch
      %19 = sbr.rel (0) target = $region17
    $region16: #{conv_bn_forward.2} parent=1 // pred_region
      _
    $region17: #{conv_bn_forward.2} parent=1 // pred_fallthru
      _
    %v20 = vld [vmem:[%s4] sm:$0x1]
    %v21 = vlaneseq
    %vm23 = vcmp.lt.s32.totalorder %v21, 96
    %v24 = vsel %vm23, %v20, %v10
    %26 = vst [vmem:[#allocation12] sm:$0x1] %v24
    %v27 = vld [vmem:[%s2] sm:$0x1]
    %v28 = vlaneseq
    %vm30 = vcmp.lt.s32.totalorder %v28, 96
    %v31 = vsel %vm30, %v27, %v11
    %33 = vst [vmem:[#allocation13] sm:$0x1] %v31
    %v34 = vld [vmem:[%s0] sm:$0xff]
    %v35 = vld [vmem:[%s0 + $0x8] sm:$0xff]
    %v36 = vld [vmem:[%s0 + $0x20] sm:$0xff]
    %v37 = vld [vmem:[%s0 + $0x28] sm:$0xff]
    %v38 = vld [vmem:[%s0 + $0x40] sm:$0xff]
    %v39 = vld [vmem:[%s0 + $0x48] sm:$0xff]
    %v40 = vld [vmem:[%s0 + $0x60] sm:$0xff]
    %v41 = vld [vmem:[%s0 + $0x68] sm:$0xff]
    %v42 = vld [vmem:[%s0 + $0x80] sm:$0xff]
    %v43 = vld [vmem:[%s0 + $0x88] sm:$0xff]
    %v44 = vld [vmem:[%s0 + $0xa0] sm:$0xff]
    %v45 = vld [vmem:[%s0 + $0xa8] sm:$0xff]
    %v46 = vld [vmem:[%s0 + $0xc0] sm:$0xff]
    %v47 = vld [vmem:[%s0 + $0xc8] sm:$0xff]
    %v48 = vld [vmem:[%s1] sm:$0x1]
    %v50 = vlaneseq
    %v51 = vshrl.u32 %v50, 7
    %v52 = vsub.s32 0, %v51
    %v53 = vrot.slane %v48, %v52
    %v55 = vmul.f32 %v34, %v53
    %v56 = vmul.f32 %v36, %v53
    %v57 = vmul.f32 %v38, %v53
    %v58 = vmul.f32 %v40, %v53
    %v59 = vmul.f32 %v42, %v53
    %v60 = vmul.f32 %v44, %v53
    %v61 = vmul.f32 %v46, %v53
    %s62 = scalar_lea.vmem %s1, 1
    %v63 = vld [vmem:[%s62] sm:$0x1]
    %v65 = vlaneseq
    %v66 = vshrl.u32 %v65, 7
    %v67 = vsub.s32 0, %v66
    %v68 = vrot.slane %v63, %v67
    %v70 = vmul.f32 %v35, %v68
    %v71 = vmul.f32 %v37, %v68
    %v72 = vmul.f32 %v39, %v68
    %v73 = vmul.f32 %v41, %v68
    %v74 = vmul.f32 %v43, %v68
    %v75 = vmul.f32 %v45, %v68
    %v76 = vmul.f32 %v47, %v68
    %v77 = vadd.f32 %v55, %v70
    %v78 = vadd.f32 %v56, %v71
    %v79 = vadd.f32 %v57, %v72
    %v80 = vadd.f32 %v58, %v73
    %v81 = vadd.f32 %v59, %v74
    %v82 = vadd.f32 %v60, %v75
    %v83 = vadd.f32 %v61, %v76
    %s84 = scalar_lea.vmem %s1, 2
    %v85 = vld [vmem:[%s84] sm:$0x1]
    %v87 = vlaneseq
    %v88 = vshrl.u32 %v87, 7
    %v89 = vsub.s32 0, %v88
    %v90 = vrot.slane %v85, %v89
    %v92 = vmul.f32 %v34, %v90
    %v93 = vmul.f32 %v36, %v90
    %v94 = vmul.f32 %v38, %v90
    %v95 = vmul.f32 %v40, %v90
    %v96 = vmul.f32 %v42, %v90
    %v97 = vmul.f32 %v44, %v90
    %v98 = vmul.f32 %v46, %v90
    %v106 = vrot.slane %v92, 1
    %v107 = vrot.slane %v93, 1
    %v108 = vrot.slane %v94, 1
    %v109 = vrot.slane %v95, 1
    %v110 = vrot.slane %v96, 1
    %v111 = vrot.slane %v97, 1
    %v112 = vrot.slane %v98, 1
    %v120 = vadd.f32 %v77, %v106
    %v121 = vadd.f32 %v78, %v107
    %v122 = vadd.f32 %v79, %v108
    %v123 = vadd.f32 %v80, %v109
    %v124 = vadd.f32 %v81, %v110
    %v125 = vadd.f32 %v82, %v111
    %v126 = vadd.f32 %v83, %v112
    %s127 = scalar_lea.vmem %s0, 16
    %v128 = vld [vmem:[%s127] sm:$0xff]
    %v129 = vld [vmem:[%s127 + $0x8] sm:$0xff]
    %v130 = vld [vmem:[%s127 + $0x20] sm:$0xff]
    %v131 = vld [vmem:[%s127 + $0x28] sm:$0xff]
    %v132 = vld [vmem:[%s127 + $0x40] sm:$0xff]
    %v133 = vld [vmem:[%s127 + $0x48] sm:$0xff]
    %v134 = vld [vmem:[%s127 + $0x60] sm:$0xff]
    %v135 = vld [vmem:[%s127 + $0x68] sm:$0xff]
    %v136 = vld [vmem:[%s127 + $0x80] sm:$0xff]
    %v137 = vld [vmem:[%s127 + $0x88] sm:$0xff]
    %v138 = vld [vmem:[%s127 + $0xa0] sm:$0xff]
    %v139 = vld [vmem:[%s127 + $0xa8] sm:$0xff]
    %v140 = vld [vmem:[%s127 + $0xc0] sm:$0xff]
    %v141 = vld [vmem:[%s127 + $0xc8] sm:$0xff]
    %s142 = scalar_lea.vmem %s1, 3
    %v143 = vld [vmem:[%s142] sm:$0x1]
    %v145 = vlaneseq
    %v146 = vshrl.u32 %v145, 7
    %v147 = vsub.s32 0, %v146
    %v148 = vrot.slane %v143, %v147
    %v150 = vmul.f32 %v128, %v148
    %v151 = vmul.f32 %v130, %v148
    %v152 = vmul.f32 %v132, %v148
    %v153 = vmul.f32 %v134, %v148
    %v154 = vmul.f32 %v136, %v148
    %v155 = vmul.f32 %v138, %v148
    %v156 = vmul.f32 %v140, %v148
    %s157 = scalar_lea.vmem %s1, 4
    %v158 = vld [vmem:[%s157] sm:$0x1]
    %v160 = vlaneseq
    %v161 = vshrl.u32 %v160, 7
    %v162 = vsub.s32 0, %v161
    %v163 = vrot.slane %v158, %v162
    %v165 = vmul.f32 %v129, %v163
    %v166 = vmul.f32 %v131, %v163
    %v167 = vmul.f32 %v133, %v163
    %v168 = vmul.f32 %v135, %v163
    %v169 = vmul.f32 %v137, %v163
    %v170 = vmul.f32 %v139, %v163
    %v171 = vmul.f32 %v141, %v163
    %v172 = vadd.f32 %v150, %v165
    %v173 = vadd.f32 %v151, %v166
    %v174 = vadd.f32 %v152, %v167
    %v175 = vadd.f32 %v153, %v168
    %v176 = vadd.f32 %v154, %v169
    %v177 = vadd.f32 %v155, %v170
    %v178 = vadd.f32 %v156, %v171
    %s179 = scalar_lea.vmem %s1, 5
    %v180 = vld [vmem:[%s179] sm:$0x1]
    %v182 = vlaneseq
    %v183 = vshrl.u32 %v182, 7
    %v184 = vsub.s32 0, %v183
    %v185 = vrot.slane %v180, %v184
    %v187 = vmul.f32 %v128, %v185
    %v188 = vmul.f32 %v130, %v185
    %v189 = vmul.f32 %v132, %v185
    %v190 = vmul.f32 %v134, %v185
    %v191 = vmul.f32 %v136, %v185
    %v192 = vmul.f32 %v138, %v185
    %v193 = vmul.f32 %v140, %v185
    %v201 = vrot.slane %v187, 1
    %v202 = vrot.slane %v188, 1
    %v203 = vrot.slane %v189, 1
    %v204 = vrot.slane %v190, 1
    %v205 = vrot.slane %v191, 1
    %v206 = vrot.slane %v192, 1
    %v207 = vrot.slane %v193, 1
    %v215 = vadd.f32 %v172, %v201
    %v216 = vadd.f32 %v173, %v202
    %v217 = vadd.f32 %v174, %v203
    %v218 = vadd.f32 %v175, %v204
    %v219 = vadd.f32 %v176, %v205
    %v220 = vadd.f32 %v177, %v206
    %v221 = vadd.f32 %v178, %v207
    %s222 = scalar_lea.vmem %s0, 32
    %v223 = vld [vmem:[%s222] sm:$0xff]
    %v224 = vld [vmem:[%s222 + $0x8] sm:$0xff]
    %v225 = vld [vmem:[%s222 + $0x20] sm:$0xff]
    %v226 = vld [vmem:[%s222 + $0x28] sm:$0xff]
    %v227 = vld [vmem:[%s222 + $0x40] sm:$0xff]
    %v228 = vld [vmem:[%s222 + $0x48] sm:$0xff]
    %v229 = vld [vmem:[%s222 + $0x60] sm:$0xff]
    %v230 = vld [vmem:[%s222 + $0x68] sm:$0xff]
    %v231 = vld [vmem:[%s222 + $0x80] sm:$0xff]
    %v232 = vld [vmem:[%s222 + $0x88] sm:$0xff]
    %v233 = vld [vmem:[%s222 + $0xa0] sm:$0xff]
    %v234 = vld [vmem:[%s222 + $0xa8] sm:$0xff]
    %v235 = vld [vmem:[%s222 + $0xc0] sm:$0xff]
    %v236 = vld [vmem:[%s222 + $0xc8] sm:$0xff]
    %s237 = scalar_lea.vmem %s1, 6
    %v238 = vld [vmem:[%s237] sm:$0x1]
    %v240 = vlaneseq
    %v241 = vshrl.u32 %v240, 7
    %v242 = vsub.s32 0, %v241
    %v243 = vrot.slane %v238, %v242
    %v245 = vmul.f32 %v223, %v243
    %v246 = vmul.f32 %v225, %v243
    %v247 = vmul.f32 %v227, %v243
    %v248 = vmul.f32 %v229, %v243
    %v249 = vmul.f32 %v231, %v243
    %v250 = vmul.f32 %v233, %v243
    %v251 = vmul.f32 %v235, %v243
    %s252 = scalar_lea.vmem %s1, 7
    %v253 = vld [vmem:[%s252] sm:$0x1]
    %v255 = vlaneseq
    %v256 = vshrl.u32 %v255, 7
    %v257 = vsub.s32 0, %v256
    %v258 = vrot.slane %v253, %v257
    %v260 = vmul.f32 %v224, %v258
    %v261 = vmul.f32 %v226, %v258
    %v262 = vmul.f32 %v228, %v258
    %v263 = vmul.f32 %v230, %v258
    %v264 = vmul.f32 %v232, %v258
    %v265 = vmul.f32 %v234, %v258
    %v266 = vmul.f32 %v236, %v258
    %v267 = vadd.f32 %v245, %v260
    %v268 = vadd.f32 %v246, %v261
    %v269 = vadd.f32 %v247, %v262
    %v270 = vadd.f32 %v248, %v263
    %v271 = vadd.f32 %v249, %v264
    %v272 = vadd.f32 %v250, %v265
    %v273 = vadd.f32 %v251, %v266
    %s274 = scalar_lea.vmem %s1, 8
    %v275 = vld [vmem:[%s274] sm:$0x1]
    %v277 = vlaneseq
    %v278 = vshrl.u32 %v277, 7
    %v279 = vsub.s32 0, %v278
    %v280 = vrot.slane %v275, %v279
    %v282 = vmul.f32 %v223, %v280
    %v283 = vmul.f32 %v225, %v280
    %v284 = vmul.f32 %v227, %v280
    %v285 = vmul.f32 %v229, %v280
    %v286 = vmul.f32 %v231, %v280
    %v287 = vmul.f32 %v233, %v280
    %v288 = vmul.f32 %v235, %v280
    %v296 = vrot.slane %v282, 1
    %v297 = vrot.slane %v283, 1
    %v298 = vrot.slane %v284, 1
    %v299 = vrot.slane %v285, 1
    %v300 = vrot.slane %v286, 1
    %v301 = vrot.slane %v287, 1
    %v302 = vrot.slane %v288, 1
    %v310 = vadd.f32 %v267, %v296
    %v311 = vadd.f32 %v268, %v297
    %v312 = vadd.f32 %v269, %v298
    %v313 = vadd.f32 %v270, %v299
    %v314 = vadd.f32 %v271, %v300
    %v315 = vadd.f32 %v272, %v301
    %v316 = vadd.f32 %v273, %v302
    %v317 = vadd.f32 %v120, %v215
    %v318 = vadd.f32 %v121, %v216
    %v319 = vadd.f32 %v122, %v217
    %v320 = vadd.f32 %v123, %v218
    %v321 = vadd.f32 %v124, %v219
    %v322 = vadd.f32 %v125, %v220
    %v323 = vadd.f32 %v126, %v221
    %v324 = vadd.f32 %v317, %v310
    %v325 = vadd.f32 %v318, %v311
    %v326 = vadd.f32 %v319, %v312
    %v327 = vadd.f32 %v320, %v313
    %v328 = vadd.f32 %v321, %v314
    %v329 = vadd.f32 %v322, %v315
    %v330 = vadd.f32 %v323, %v316
    %vm331 = vcmask 1046528
    %v332 = vsel %vm331, %v324, 0.0
    %v333 = vsel %vm331, %v325, 0.0
    %v334 = vadd.f32 %v332, %v333
    %v335 = vsel %vm331, %v326, 0.0
    %v336 = vadd.f32 %v334, %v335
    %v337 = vsel %vm331, %v327, 0.0
    %v338 = vadd.f32 %v336, %v337
    %v339 = vsel %vm331, %v328, 0.0
    %v340 = vadd.f32 %v338, %v339
    %v341 = vsel %vm331, %v329, 0.0
    %v342 = vadd.f32 %v340, %v341
    %v343 = vsel %vm331, %v330, 0.0
    %v344 = vadd.f32 %v342, %v343
    %v345 = vrot.slane %v344, 4
    %v346 = vadd.f32 %v344, %v345
    %v347 = vrot.slane %v346, 2
    %v348 = vadd.f32 %v346, %v347
    %v349 = vrot.slane %v348, 1
    %v350 = vadd.f32 %v348, %v349
    %v351 = vmul.f32 %v350, 0.020408163
    %v352 = vsub.f32 %v324, %v351
    %v353 = vsub.f32 %v325, %v351
    %v354 = vsub.f32 %v326, %v351
    %v355 = vsub.f32 %v327, %v351
    %v356 = vsub.f32 %v328, %v351
    %v357 = vsub.f32 %v329, %v351
    %v358 = vsub.f32 %v330, %v351
    %v359 = vmul.f32 %v352, %v352
    %v360 = vmul.f32 %v353, %v353
    %v361 = vmul.f32 %v354, %v354
    %v362 = vmul.f32 %v355, %v355
    %v363 = vmul.f32 %v356, %v356
    %v364 = vmul.f32 %v357, %v357
    %v365 = vmul.f32 %v358, %v358
    %v366 = vsel %vm331, %v359, 0.0
    %v367 = vsel %vm331, %v360, 0.0
    %v368 = vadd.f32 %v366, %v367
    %v369 = vsel %vm331, %v361, 0.0
    %v370 = vadd.f32 %v368, %v369
    %v371 = vsel %vm331, %v362, 0.0
    %v372 = vadd.f32 %v370, %v371
    %v373 = vsel %vm331, %v363, 0.0
    %v374 = vadd.f32 %v372, %v373
    %v375 = vsel %vm331, %v364, 0.0
    %v376 = vadd.f32 %v374, %v375
    %v377 = vsel %vm331, %v365, 0.0
    %v378 = vadd.f32 %v376, %v377
    %v379 = vrot.slane %v378, 4
    %v380 = vadd.f32 %v378, %v379
    %v381 = vrot.slane %v380, 2
    %v382 = vadd.f32 %v380, %v381
    %v383 = vrot.slane %v382, 1
    %v384 = vadd.f32 %v382, %v383
    %v385 = vmul.f32 %v384, 0.020408163
    %v386 = vadd.f32 %v385, 1e-05
    %v387 = vrsqrt.pop %v386
    %v388 = vld [vmem:[#allocation12] sm:$0x1]
    %v389 = vmul.f32 %v387, %v388
    %v390 = vlaneseq
    %v391 = vshrl.u32 %v390, 7
    %v392 = vsub.s32 0, %v391
    %v393 = vrot.slane %v389, %v392
    %v394 = vmul.f32 %v352, %v393
    %v395 = vmul.f32 %v353, %v393
    %v396 = vmul.f32 %v354, %v393
    %v397 = vmul.f32 %v355, %v393
    %v398 = vmul.f32 %v356, %v393
    %v399 = vmul.f32 %v357, %v393
    %v400 = vmul.f32 %v358, %v393
    %v401 = vld [vmem:[#allocation13] sm:$0x1]
    %v403 = vlaneseq
    %v404 = vshrl.u32 %v403, 7
    %v405 = vsub.s32 0, %v404
    %v406 = vrot.slane %v401, %v405
    %v408 = vadd.f32 %v394, %v406
    %v409 = vadd.f32 %v395, %v406
    %v410 = vadd.f32 %v396, %v406
    %v411 = vadd.f32 %v397, %v406
    %v412 = vadd.f32 %v398, %v406
    %v413 = vadd.f32 %v399, %v406
    %v414 = vadd.f32 %v400, %v406
    %415 = vst [vmem:[%s5] sm:$0x7f] %v408
    %416 = vst [vmem:[%s5 + $0x8] sm:$0x7f] %v409
    %417 = vst [vmem:[%s5 + $0x10] sm:$0x7f] %v410
    %418 = vst [vmem:[%s5 + $0x18] sm:$0x7f] %v411
    %419 = vst [vmem:[%s5 + $0x20] sm:$0x7f] %v412
    %420 = vst [vmem:[%s5 + $0x28] sm:$0x7f] %v413
    %421 = vst [vmem:[%s5 + $0x30] sm:$0x7f] %v414
    // Predicated region
    $region18: #{conv_bn_forward.2} parent=1 // pred_check
      _
    $region19: #{conv_bn_forward.2} parent=1 // pred_check_branch
      %423 = sbr.rel (0) target = $region21
    $region20: #{conv_bn_forward.2} parent=1 // pred_region
      _
    $region21: #{conv_bn_forward.2} parent=1 // pred_fallthru
      _
    // Predicated region
    $region22: #{conv_bn_forward.2} parent=1 // pred_check
      _
    $region23: #{conv_bn_forward.2} parent=1 // pred_check_branch
      %425 = sbr.rel (0) target = $region25
    $region24: #{conv_bn_forward.2} parent=1 // pred_region
      _
    $region25: #{conv_bn_forward.2} parent=1 // pred_fallthru
      _

</llo_original>
